<compile_context>
chip_gen: v6e
topology: v6e:2x2x1
jax: 0.10.0
libtpu: 0.0.40
codegen_flags: <defaults>
</compile_context>

<pallas_src>
import functools

import jax
import jax.numpy as jnp
from jax.experimental import pallas as pl
from jax.experimental.pallas import tpu as pltpu


def _round_up(x, m):
    return ((x + m - 1) // m) * m


def _bilateral_slice_kernel(g_ref, wy_ref, wx_ref, guide_ref, inp_ref, out_ref, *,
                            GH, GW, GD, Cpad, CI, CO, has_offset):
    # g_ref:     (1, GD*Cpad, Q) bf16, row = d*Cpad + i*CO + o  (rows >= C in a depth are zero)
    # wy_ref:    (GH, TP) f32   per-pixel row tent weights
    # wx_ref:    (GW, TP) f32   per-pixel column tent weights
    # guide_ref: (1, 1, TP) f32
    # inp_ref:   (1, CI, TP) f32
    # out_ref:   (1, CO, TP) f32
    wy = wy_ref[...]                                   # (GH, TP) f32
    wx = wx_ref[...]                                   # (GW, TP) f32

    # Rebuild the (Q, TP) spatial tent-weight product in VMEM (separable wy ⊗ wx) and cast
    # the MXU operand to bf16. Per-gy pieces keep the f32 intermediates small and the
    # concatenation sublane-aligned (GW rows per piece, f32 pieces -> one cast at the end).
    rows = [wy[gy:gy + 1, :] * wx for gy in range(GH)]            # GH x (GW, TP) f32
    wxy = jnp.concatenate(rows, axis=0).astype(jnp.bfloat16)      # (Q, TP) bf16, row q = gy*GW + gx

    g2 = g_ref[0]                                                 # (GD*Cpad, Q) bf16

    # Spatial slice on the MXU: (GD*Cpad, Q) @ (Q, TP) -> (GD*Cpad, TP), f32 accumulation.
    t = jnp.dot(g2, wxy, preferred_element_type=jnp.float32)
    tp = t.shape[-1]

    # Depth (guide) tent weights, f32 on the VPU; clamp reproduces clamp-to-edge for guide
    # in [0, 1].
    gz = jnp.clip(guide_ref[0] * GD, 0.5, GD - 0.5)               # (1, TP)
    wd = [jnp.maximum(1.0 - jnp.abs(gz - (d + 0.5)), 0.0) for d in range(GD)]

    # Depth reduction chunked over 8-sublane rows: chunk outer, d inner, d=0 peeled so each
    # accumulator chunk stays in vregs across all GD iterations (no zeros init, no spills of
    # the full (Cpad, TP) accumulator per depth step).
    chunks = []
    for c0 in range(0, Cpad, 8):
        acc = wd[0] * t[c0:c0 + 8, :]
        for d in range(1, GD):
            acc = acc + wd[d] * t[d * Cpad + c0:d * Cpad + c0 + 8, :]
        chunks.append(acc)
    coeff = chunks[0] if len(chunks) == 1 else jnp.concatenate(chunks, axis=0)  # (Cpad, TP)

    # Affine apply: channel row c' = i*CO + o; the i == CI block is the per-output offset.
    inp = inp_ref[0]                                              # (CI, TP)
    if has_offset:
        acc = coeff[CI * CO:CI * CO + CO, :]                      # (CO, TP)
    else:
        acc = jnp.zeros((CO, tp), jnp.float32)
    for i in range(CI):
        acc = acc + coeff[i * CO:(i + 1) * CO, :] * inp[i:i + 1, :]
    out_ref[0] = acc                                              # one dense (CO, TP) store


def bilateral_slice(bilateral_grid, guide, inp, has_offset=True, tile_p=4096):
    B, GH, GW, GD, C = bilateral_grid.shape
    _, H, W = guide.shape
    CI = inp.shape[-1]
    CS = CI + 1 if has_offset else CI
    assert C % CS == 0, "grid channels must be divisible by coeff stride"
    CO = C // CS
    P = H * W
    Q = GH * GW
    Cpad = _round_up(C, 8)           # sublane-aligned per-depth channel stride
    f32 = jnp.float32

    tile_p = _round_up(tile_p, 128)
    TP = min(tile_p, _round_up(P, 128))        # pixel tile (lane dim), multiple of 128
    Ppad = _round_up(P, TP)
    NP = Ppad // TP

    # ---- batch-invariant separable spatial tent weights (only (GH+GW) x P, never Q x P) ----
    fy = jnp.clip((jnp.arange(H, dtype=f32) + 0.5) * (GH / H), 0.5, GH - 0.5)   # (H,)
    fx = jnp.clip((jnp.arange(W, dtype=f32) + 0.5) * (GW / W), 0.5, GW - 0.5)   # (W,)
    cy = jnp.arange(GH, dtype=f32) + 0.5
    cx = jnp.arange(GW, dtype=f32) + 0.5
    wy_hw = jnp.maximum(1.0 - jnp.abs(fy[None, :] - cy[:, None]), 0.0)          # (GH, H)
    wx_hw = jnp.maximum(1.0 - jnp.abs(fx[None, :] - cx[:, None]), 0.0)          # (GW, W)
    wy_p = jnp.pad(jnp.repeat(wy_hw, W, axis=1), ((0, 0), (0, Ppad - P)))       # (GH, Ppad), p = y*W + x
    wx_p = jnp.pad(jnp.tile(wx_hw, (1, H)), ((0, 0), (0, Ppad - P)))            # (GW, Ppad)

    # ---- grid: reorder channels to c' = i*CO + o, pad to Cpad, flatten, cast MXU operand to bf16 ----
    g = bilateral_grid.astype(f32).reshape(B, GH, GW, GD, CO, CS)
    g = jnp.transpose(g, (0, 1, 2, 3, 5, 4)).reshape(B, Q, GD, C)               # c' = i*CO + o
    g = jnp.pad(g, ((0, 0), (0, 0), (0, 0), (0, Cpad - C))).reshape(B, Q, GD * Cpad)
    g2 = jnp.transpose(g, (0, 2, 1)).astype(jnp.bfloat16)                       # (B, GD*Cpad, Q)

    # ---- guide / input transposed so pixels sit on the lane axis ----
    guide_t = jnp.pad(guide.astype(f32).reshape(B, 1, P),
                      ((0, 0), (0, 0), (0, Ppad - P)))                          # (B, 1, Ppad)
    inp_t = jnp.transpose(inp.astype(f32).reshape(B, P, CI), (0, 2, 1))
    inp_t = jnp.pad(inp_t, ((0, 0), (0, 0), (0, Ppad - P)))                     # (B, CI, Ppad)

    kernel = functools.partial(_bilateral_slice_kernel, GH=GH, GW=GW, GD=GD,
                               Cpad=Cpad, CI=CI, CO=CO, has_offset=has_offset)

    cost = pl.CostEstimate(
        flops=int(2 * B * Ppad * Q * GD * Cpad),
        transcendentals=0,
        bytes_accessed=int(2 * B * NP * GD * Cpad * Q            # bf16 grid slab, per (p, b) step
                           + 4 * (GH + GW) * Ppad                # wy/wx read once (resident across b)
                           + 4 * B * Ppad * (1 + CI + CO)),      # guide + image + output
    )

    out = pl.pallas_call(
        kernel,
        out_shape=jax.ShapeDtypeStruct((B, CO, Ppad), f32),
        grid_spec=pltpu.PrefetchScalarGridSpec(
            num_scalar_prefetch=0,
            grid=(NP, B),                                   # batch innermost: wy/wx stay VMEM-resident across b
            in_specs=[
                pl.BlockSpec((1, GD * Cpad, Q), lambda p, b: (b, 0, 0)),   # small bf16 grid slab
                pl.BlockSpec((GH, TP), lambda p, b: (0, p)),               # separable row tent weights
                pl.BlockSpec((GW, TP), lambda p, b: (0, p)),               # separable col tent weights
                pl.BlockSpec((1, 1, TP), lambda p, b: (b, 0, p)),          # guide
                pl.BlockSpec((1, CI, TP), lambda p, b: (b, 0, p)),         # image
            ],
            out_specs=pl.BlockSpec((1, CO, TP), lambda p, b: (b, 0, p)),
        ),
        compiler_params=pltpu.CompilerParams(
            dimension_semantics=("parallel", "parallel"),
            vmem_limit_bytes=32 * 1024 * 1024),
        cost_estimate=cost,
    )(g2, wy_p, wx_p, guide_t, inp_t)

    out = out[:, :, :P]                                      # strip pixel padding
    return jnp.transpose(out, (0, 2, 1)).reshape(B, H, W, CO)


def reference_bilateral_slice(bgrid, guide, inp, has_offset=True):
    """Direct trilinear-gather reference (mirrors the CUDA loop), pure f32."""
    bgrid = bgrid.astype(jnp.float32)
    inp = inp.astype(jnp.float32)
    B, GH, GW, GD, C = bgrid.shape
    _, H, W = guide.shape
    CI = inp.shape[-1]
    CS = CI + 1 if has_offset else CI
    CO = C // CS

    ys = (jnp.arange(H, dtype=jnp.float32) + 0.5) * GH / H          # (H,)
    xs = (jnp.arange(W, dtype=jnp.float32) + 0.5) * GW / W          # (W,)
    gz = guide.astype(jnp.float32) * GD                             # (B,H,W)
    fy = jnp.floor(ys - 0.5).astype(jnp.int32)
    fx = jnp.floor(xs - 0.5).astype(jnp.int32)
    fz = jnp.floor(gz - 0.5).astype(jnp.int32)

    b_idx = jnp.arange(B)[:, None, None]
    coeff = jnp.zeros((B, H, W, C), jnp.float32)
    for dy in range(2):
        yy = fy + dy
        y_ = jnp.clip(yy, 0, GH - 1)
        wy = jnp.maximum(1.0 - jnp.abs(yy.astype(jnp.float32) + 0.5 - ys), 0.0)
        for dx in range(2):
            xx = fx + dx
            x_ = jnp.clip(xx, 0, GW - 1)
            wx = jnp.maximum(1.0 - jnp.abs(xx.astype(jnp.float32) + 0.5 - xs), 0.0)
            for dz in range(2):
                zz = fz + dz
                z_ = jnp.clip(zz, 0, GD - 1)
                wz = jnp.maximum(1.0 - jnp.abs(zz.astype(jnp.float32) + 0.5 - gz), 0.0)
                g = bgrid[b_idx, y_[None, :, None], x_[None, None, :], z_, :]   # (B,H,W,C)
                w = wy[None, :, None] * wx[None, None, :] * wz                   # (B,H,W)
                coeff = coeff + g * w[..., None]

    coeff = coeff.reshape(B, H, W, CO, CS)
    out = jnp.sum(coeff[..., :CI] * inp[:, :, :, None, :], axis=-1)
    if has_offset:
        out = out + coeff[..., CI]
    return out


if __name__ == "__main__":
    # TODO(synk): only the forward pass is implemented (the custom autograd backward is out of scope).
    B, H, W = 2, 16, 16
    GH, GW, GD = 8, 8, 4
    CI, CO = 3, 3
    has_offset = True
    C = CO * (CI + 1 if has_offset else CI)

    key = jax.random.PRNGKey(0)
    k1, k2, k3 = jax.random.split(key, 3)
    bilateral_grid = jax.random.normal(k1, (B, GH, GW, GD, C), jnp.float32)
    guide = jax.nn.sigmoid(jax.random.normal(k2, (B, H, W), jnp.float32))   # guide in [0, 1]
    image = jax.random.normal(k3, (B, H, W, CI), jnp.float32)

    out = bilateral_slice(bilateral_grid, guide, image, has_offset=has_offset)
    out = jax.block_until_ready(out)

    # The kernel feeds the MXU bf16 grid coefficients, so the reference gets the same
    # bf16-rounded grid; the remaining divergence (bf16 tent-weight product + f32
    # accumulation order) is covered by the loosened tolerance.
    grid_bf16 = bilateral_grid.astype(jnp.bfloat16).astype(jnp.float32)
    ref = reference_bilateral_slice(grid_bf16, guide, image, has_offset=has_offset)
    ref = jax.block_until_ready(ref)

    assert out.shape == (B, H, W, CO)
    if not bool(jnp.allclose(out, ref, atol=2e-2, rtol=2e-2)):
        err = float(jnp.max(jnp.abs(out - ref)))
        raise AssertionError(f"Pallas bilateral slice does not match reference (max abs err {err:.3e})")
    print("KERNEL_OK")
</pallas_src>

<mosaic_0001>
module attributes {stable_mosaic.version = 11 : i64} {
  func.func @_bilateral_slice_kernel(%arg0: i32, %arg1: i32, %arg2: memref<1x64x64xbf16, #tpu.memory_space<vmem>>, %arg3: memref<8x256xf32, #tpu.memory_space<vmem>>, %arg4: memref<8x256xf32, #tpu.memory_space<vmem>>, %arg5: memref<1x1x256xf32, #tpu.memory_space<vmem>>, %arg6: memref<1x3x256xf32, #tpu.memory_space<vmem>>, %arg7: memref<1x3x256xf32, #tpu.memory_space<vmem>>) attributes {dimension_semantics = [#tpu.dimension_semantics<parallel>, #tpu.dimension_semantics<parallel>], iteration_bounds = array<i64: 1, 2>, scalar_prefetch = 0 : i64, scratch_operands = 0 : i64, tpu.core_type = #tpu.core_type<tc>, window_params = [{transform_indices = @transform_0, window_bounds = array<i64: 1, 64, 64>}, {transform_indices = @transform_1, window_bounds = array<i64: 8, 256>}, {transform_indices = @transform_2, window_bounds = array<i64: 8, 256>}, {transform_indices = @transform_3, window_bounds = array<i64: 1, 1, 256>}, {transform_indices = @transform_4, window_bounds = array<i64: 1, 3, 256>}, {transform_indices = @transform_5, window_bounds = array<i64: 1, 3, 256>}]} {
    %c0 = arith.constant 0 : index
    %c0_0 = arith.constant 0 : index
    %0 = vector.load %arg3[%c0, %c0_0] : memref<8x256xf32, #tpu.memory_space<vmem>>, vector<8x256xf32>
    %c0_1 = arith.constant 0 : index
    %c0_2 = arith.constant 0 : index
    %1 = vector.load %arg4[%c0_1, %c0_2] : memref<8x256xf32, #tpu.memory_space<vmem>>, vector<8x256xf32>
    %2 = vector.extract_strided_slice %0 {offsets = [0, 0], sizes = [1, 256], strides = [1, 1]} : vector<8x256xf32> to vector<1x256xf32>
    %3 = vector.broadcast %2 : vector<1x256xf32> to vector<8x256xf32>
    %4 = arith.mulf %3, %1 : vector<8x256xf32>
    %5 = vector.extract_strided_slice %0 {offsets = [1, 0], sizes = [1, 256], strides = [1, 1]} : vector<8x256xf32> to vector<1x256xf32>
    %6 = vector.broadcast %5 : vector<1x256xf32> to vector<8x256xf32>
    %7 = arith.mulf %6, %1 : vector<8x256xf32>
    %8 = vector.extract_strided_slice %0 {offsets = [2, 0], sizes = [1, 256], strides = [1, 1]} : vector<8x256xf32> to vector<1x256xf32>
    %9 = vector.broadcast %8 : vector<1x256xf32> to vector<8x256xf32>
    %10 = arith.mulf %9, %1 : vector<8x256xf32>
    %11 = vector.extract_strided_slice %0 {offsets = [3, 0], sizes = [1, 256], strides = [1, 1]} : vector<8x256xf32> to vector<1x256xf32>
    %12 = vector.broadcast %11 : vector<1x256xf32> to vector<8x256xf32>
    %13 = arith.mulf %12, %1 : vector<8x256xf32>
    %14 = vector.extract_strided_slice %0 {offsets = [4, 0], sizes = [1, 256], strides = [1, 1]} : vector<8x256xf32> to vector<1x256xf32>
    %15 = vector.broadcast %14 : vector<1x256xf32> to vector<8x256xf32>
    %16 = arith.mulf %15, %1 : vector<8x256xf32>
    %17 = vector.extract_strided_slice %0 {offsets = [5, 0], sizes = [1, 256], strides = [1, 1]} : vector<8x256xf32> to vector<1x256xf32>
    %18 = vector.broadcast %17 : vector<1x256xf32> to vector<8x256xf32>
    %19 = arith.mulf %18, %1 : vector<8x256xf32>
    %20 = vector.extract_strided_slice %0 {offsets = [6, 0], sizes = [1, 256], strides = [1, 1]} : vector<8x256xf32> to vector<1x256xf32>
    %21 = vector.broadcast %20 : vector<1x256xf32> to vector<8x256xf32>
    %22 = arith.mulf %21, %1 : vector<8x256xf32>
    %23 = vector.extract_strided_slice %0 {offsets = [7, 0], sizes = [1, 256], strides = [1, 1]} : vector<8x256xf32> to vector<1x256xf32>
    %24 = vector.broadcast %23 : vector<1x256xf32> to vector<8x256xf32>
    %25 = arith.mulf %24, %1 : vector<8x256xf32>
    %26 = tpu.concatenate %4, %7, %10, %13, %16, %19, %22, %25 in 0 : vector<8x256xf32>, vector<8x256xf32>, vector<8x256xf32>, vector<8x256xf32>, vector<8x256xf32>, vector<8x256xf32>, vector<8x256xf32>, vector<8x256xf32> -> vector<64x256xf32>
    %27 = arith.truncf %26 : vector<64x256xf32> to vector<64x256xbf16>
    %c0_3 = arith.constant 0 : index
    %c0_4 = arith.constant 0 : index
    %c0_5 = arith.constant 0 : index
    %28 = vector.load %arg2[%c0_3, %c0_4, %c0_5] : memref<1x64x64xbf16, #tpu.memory_space<vmem>>, vector<1x64x64xbf16>
    %29 = vector.shape_cast %28 : vector<1x64x64xbf16> to vector<64x64xbf16>
    %cst = arith.constant dense<0.000000e+00> : vector<64x256xf32>
    %30 = tpu.matmul %29, %27, %cst {dimension_numbers = #tpu.dot_dimension_numbers<[1], [0], [0], [1], [0, 0, 1, 1], [], []>} : vector<64x64xbf16>, vector<64x256xbf16>, vector<64x256xf32> -> vector<64x256xf32>
    %c0_6 = arith.constant 0 : index
    %c0_7 = arith.constant 0 : index
    %c0_8 = arith.constant 0 : index
    %31 = vector.load %arg5[%c0_6, %c0_7, %c0_8] : memref<1x1x256xf32, #tpu.memory_space<vmem>>, vector<1x1x256xf32>
    %32 = vector.shape_cast %31 : vector<1x1x256xf32> to vector<1x256xf32>
    %cst_9 = arith.constant 4.000000e+00 : f32
    %33 = vector.broadcast %cst_9 : f32 to vector<1x256xf32>
    %34 = arith.mulf %32, %33 : vector<1x256xf32>
    %cst_10 = arith.constant 5.000000e-01 : f32
    %cst_11 = arith.constant 3.500000e+00 : f32
    %35 = vector.broadcast %cst_10 : f32 to vector<1x256xf32>
    %36 = arith.maximumf %35, %34 : vector<1x256xf32>
    %37 = vector.broadcast %cst_11 : f32 to vector<1x256xf32>
    %38 = arith.minimumf %37, %36 : vector<1x256xf32>
    %cst_12 = arith.constant 5.000000e-01 : f32
    %39 = vector.broadcast %cst_12 : f32 to vector<1x256xf32>
    %40 = arith.subf %38, %39 : vector<1x256xf32>
    %41 = math.absf %40 : vector<1x256xf32>
    %cst_13 = arith.constant 1.000000e+00 : f32
    %42 = vector.broadcast %cst_13 : f32 to vector<1x256xf32>
    %43 = arith.subf %42, %41 : vector<1x256xf32>
    %cst_14 = arith.constant 0.000000e+00 : f32
    %44 = vector.broadcast %cst_14 : f32 to vector<1x256xf32>
    %45 = arith.maximumf %43, %44 : vector<1x256xf32>
    %cst_15 = arith.constant 1.500000e+00 : f32
    %46 = vector.broadcast %cst_15 : f32 to vector<1x256xf32>
    %47 = arith.subf %38, %46 : vector<1x256xf32>
    %48 = math.absf %47 : vector<1x256xf32>
    %cst_16 = arith.constant 1.000000e+00 : f32
    %49 = vector.broadcast %cst_16 : f32 to vector<1x256xf32>
    %50 = arith.subf %49, %48 : vector<1x256xf32>
    %cst_17 = arith.constant 0.000000e+00 : f32
    %51 = vector.broadcast %cst_17 : f32 to vector<1x256xf32>
    %52 = arith.maximumf %50, %51 : vector<1x256xf32>
    %cst_18 = arith.constant 2.500000e+00 : f32
    %53 = vector.broadcast %cst_18 : f32 to vector<1x256xf32>
    %54 = arith.subf %38, %53 : vector<1x256xf32>
    %55 = math.absf %54 : vector<1x256xf32>
    %cst_19 = arith.constant 1.000000e+00 : f32
    %56 = vector.broadcast %cst_19 : f32 to vector<1x256xf32>
    %57 = arith.subf %56, %55 : vector<1x256xf32>
    %cst_20 = arith.constant 0.000000e+00 : f32
    %58 = vector.broadcast %cst_20 : f32 to vector<1x256xf32>
    %59 = arith.maximumf %57, %58 : vector<1x256xf32>
    %cst_21 = arith.constant 3.500000e+00 : f32
    %60 = vector.broadcast %cst_21 : f32 to vector<1x256xf32>
    %61 = arith.subf %38, %60 : vector<1x256xf32>
    %62 = math.absf %61 : vector<1x256xf32>
    %cst_22 = arith.constant 1.000000e+00 : f32
    %63 = vector.broadcast %cst_22 : f32 to vector<1x256xf32>
    %64 = arith.subf %63, %62 : vector<1x256xf32>
    %cst_23 = arith.constant 0.000000e+00 : f32
    %65 = vector.broadcast %cst_23 : f32 to vector<1x256xf32>
    %66 = arith.maximumf %64, %65 : vector<1x256xf32>
    %67 = vector.extract_strided_slice %30 {offsets = [0, 0], sizes = [8, 256], strides = [1, 1]} : vector<64x256xf32> to vector<8x256xf32>
    %68 = vector.broadcast %45 : vector<1x256xf32> to vector<8x256xf32>
    %69 = arith.mulf %68, %67 : vector<8x256xf32>
    %70 = vector.extract_strided_slice %30 {offsets = [16, 0], sizes = [8, 256], strides = [1, 1]} : vector<64x256xf32> to vector<8x256xf32>
    %71 = vector.broadcast %52 : vector<1x256xf32> to vector<8x256xf32>
    %72 = arith.mulf %71, %70 : vector<8x256xf32>
    %73 = arith.addf %69, %72 : vector<8x256xf32>
    %74 = vector.extract_strided_slice %30 {offsets = [32, 0], sizes = [8, 256], strides = [1, 1]} : vector<64x256xf32> to vector<8x256xf32>
    %75 = vector.broadcast %59 : vector<1x256xf32> to vector<8x256xf32>
    %76 = arith.mulf %75, %74 : vector<8x256xf32>
    %77 = arith.addf %73, %76 : vector<8x256xf32>
    %78 = vector.extract_strided_slice %30 {offsets = [48, 0], sizes = [8, 256], strides = [1, 1]} : vector<64x256xf32> to vector<8x256xf32>
    %79 = vector.broadcast %66 : vector<1x256xf32> to vector<8x256xf32>
    %80 = arith.mulf %79, %78 : vector<8x256xf32>
    %81 = arith.addf %77, %80 : vector<8x256xf32>
    %82 = vector.extract_strided_slice %30 {offsets = [8, 0], sizes = [8, 256], strides = [1, 1]} : vector<64x256xf32> to vector<8x256xf32>
    %83 = vector.broadcast %45 : vector<1x256xf32> to vector<8x256xf32>
    %84 = arith.mulf %83, %82 : vector<8x256xf32>
    %85 = vector.extract_strided_slice %30 {offsets = [24, 0], sizes = [8, 256], strides = [1, 1]} : vector<64x256xf32> to vector<8x256xf32>
    %86 = vector.broadcast %52 : vector<1x256xf32> to vector<8x256xf32>
    %87 = arith.mulf %86, %85 : vector<8x256xf32>
    %88 = arith.addf %84, %87 : vector<8x256xf32>
    %89 = vector.extract_strided_slice %30 {offsets = [40, 0], sizes = [8, 256], strides = [1, 1]} : vector<64x256xf32> to vector<8x256xf32>
    %90 = vector.broadcast %59 : vector<1x256xf32> to vector<8x256xf32>
    %91 = arith.mulf %90, %89 : vector<8x256xf32>
    %92 = arith.addf %88, %91 : vector<8x256xf32>
    %93 = vector.extract_strided_slice %30 {offsets = [56, 0], sizes = [8, 256], strides = [1, 1]} : vector<64x256xf32> to vector<8x256xf32>
    %94 = vector.broadcast %66 : vector<1x256xf32> to vector<8x256xf32>
    %95 = arith.mulf %94, %93 : vector<8x256xf32>
    %96 = arith.addf %92, %95 : vector<8x256xf32>
    %97 = tpu.concatenate %81, %96 in 0 : vector<8x256xf32>, vector<8x256xf32> -> vector<16x256xf32>
    %c0_24 = arith.constant 0 : index
    %c0_25 = arith.constant 0 : index
    %c0_26 = arith.constant 0 : index
    %98 = vector.load %arg6[%c0_24, %c0_25, %c0_26] : memref<1x3x256xf32, #tpu.memory_space<vmem>>, vector<1x3x256xf32>
    %99 = vector.shape_cast %98 : vector<1x3x256xf32> to vector<3x256xf32>
    %100 = vector.extract_strided_slice %97 {offsets = [9, 0], sizes = [3, 256], strides = [1, 1]} : vector<16x256xf32> to vector<3x256xf32>
    %101 = vector.extract_strided_slice %97 {offsets = [0, 0], sizes = [3, 256], strides = [1, 1]} : vector<16x256xf32> to vector<3x256xf32>
    %102 = vector.extract_strided_slice %99 {offsets = [0, 0], sizes = [1, 256], strides = [1, 1]} : vector<3x256xf32> to vector<1x256xf32>
    %103 = vector.broadcast %102 : vector<1x256xf32> to vector<3x256xf32>
    %104 = arith.mulf %101, %103 : vector<3x256xf32>
    %105 = arith.addf %100, %104 : vector<3x256xf32>
    %106 = vector.extract_strided_slice %97 {offsets = [3, 0], sizes = [3, 256], strides = [1, 1]} : vector<16x256xf32> to vector<3x256xf32>
    %107 = vector.extract_strided_slice %99 {offsets = [1, 0], sizes = [1, 256], strides = [1, 1]} : vector<3x256xf32> to vector<1x256xf32>
    %108 = vector.broadcast %107 : vector<1x256xf32> to vector<3x256xf32>
    %109 = arith.mulf %106, %108 : vector<3x256xf32>
    %110 = arith.addf %105, %109 : vector<3x256xf32>
    %111 = vector.extract_strided_slice %97 {offsets = [6, 0], sizes = [3, 256], strides = [1, 1]} : vector<16x256xf32> to vector<3x256xf32>
    %112 = vector.extract_strided_slice %99 {offsets = [2, 0], sizes = [1, 256], strides = [1, 1]} : vector<3x256xf32> to vector<1x256xf32>
    %113 = vector.broadcast %112 : vector<1x256xf32> to vector<3x256xf32>
    %114 = arith.mulf %111, %113 : vector<3x256xf32>
    %115 = arith.addf %110, %114 : vector<3x256xf32>
    %c0_27 = arith.constant 0 : index
    %c0_28 = arith.constant 0 : index
    %c0_29 = arith.constant 0 : index
    %116 = vector.load %arg7[%c0_27, %c0_28, %c0_29] : memref<1x3x256xf32, #tpu.memory_space<vmem>>, vector<1x3x256xf32>
    %117 = vector.shape_cast %116 : vector<1x3x256xf32> to vector<3x256xf32>
    %118 = vector.shape_cast %115 : vector<3x256xf32> to vector<1x3x256xf32>
    tpu.vector_store %arg7[%c0_27, %c0_28, %c0_29], %118 {strides = array<i32>} : memref<1x3x256xf32, #tpu.memory_space<vmem>>, vector<1x3x256xf32>,
    return
  }
  func.func @transform_0(%arg0: i32, %arg1: i32) -> (i32, i32, i32) {
    %c0_i32 = arith.constant 0 : i32
    %c0_i32_0 = arith.constant 0 : i32
    %c0_i32_1 = arith.constant 0 : i32
    return %arg1, %c0_i32, %c0_i32_0 : i32, i32, i32
  }
  func.func @transform_1(%arg0: i32, %arg1: i32) -> (i32, i32) {
    %c0_i32 = arith.constant 0 : i32
    %c0_i32_0 = arith.constant 0 : i32
    return %c0_i32, %arg0 : i32, i32
  }
  func.func @transform_2(%arg0: i32, %arg1: i32) -> (i32, i32) {
    %c0_i32 = arith.constant 0 : i32
    %c0_i32_0 = arith.constant 0 : i32
    return %c0_i32, %arg0 : i32, i32
  }
  func.func @transform_3(%arg0: i32, %arg1: i32) -> (i32, i32, i32) {
    %c0_i32 = arith.constant 0 : i32
    %c0_i32_0 = arith.constant 0 : i32
    return %arg1, %c0_i32, %arg0 : i32, i32, i32
  }
  func.func @transform_4(%arg0: i32, %arg1: i32) -> (i32, i32, i32) {
    %c0_i32 = arith.constant 0 : i32
    %c0_i32_0 = arith.constant 0 : i32
    return %arg1, %c0_i32, %arg0 : i32, i32, i32
  }
  func.func @transform_5(%arg0: i32, %arg1: i32) -> (i32, i32, i32) {
    %c0_i32 = arith.constant 0 : i32
    %c0_i32_0 = arith.constant 0 : i32
    return %arg1, %c0_i32, %arg0 : i32, i32, i32
  }
}

</mosaic_0001>

<llo_original>
// kernel: tpu_custom_call.1
$region0: #{tpu_custom_call.1}
  #allocation0 [shape = 'u32[]', space=smem, size = 0x4, offset = 0x4, fixed_abs, tag = 'smem constant byte address 0x4 - core index']
  #allocation1 [shape = 'u32[144,128]{1,0:T(1,128)}', space=vmem, size = 0x12000, scoped, tag = 'internal scratch']
  %s0 = inlined_call_operand.hbm [shape: bf16[2,64,64], index: 0, kind: input, shape index: {}]
  %s1 = inlined_call_operand.vmem [shape: f32[8,256], index: 1, kind: input, shape index: {}]
  %s2 = inlined_call_operand.hbm [shape: f32[8,256], index: 2, kind: input, shape index: {}]
  %s3 = inlined_call_operand.vmem [shape: f32[2,1,256], index: 3, kind: input, shape index: {}]
  %s4 = inlined_call_operand.vmem [shape: f32[2,3,256], index: 4, kind: input, shape index: {}]
  %s5 = inlined_call_operand.vmem [shape: f32[2,3,256], index: 5, kind: output, shape index: {}]
  %s6 = sld [smem:[#allocation0]]
  $region61: #{tpu_custom_call.1} parent=0
    _
  %s8 = ssub.s32 1, %s6
  %s9 = scalar_select 0, %s8, %s6
  $region1: #{tpu_custom_call.1} parent=0
    #allocation2 [shape = 'u8[32768]{0}', space=vmem, size = 0x8000, scoped, tag = 'input window, operand 0']
    #allocation3 [shape = 's32[2]{0}', space=sflag, size = 0x8, scoped, tag = 'scoped memory for tpu_custom_call.1']
    #allocation4 [shape = 'u8[8192]{0}', space=vmem, size = 0x2000, scoped, tag = 'input window, operand 2, single buffered']
    #allocation5 [shape = 's32[1]{0}', space=sflag, size = 0x4, scoped, tag = 'scoped memory for tpu_custom_call.1']
    %10 = vsyncpa [#allocation3], 0
    %s11 = scalar_lea.sflag [#allocation3], 1
    %12 = vsyncpa %s11, 0
    %13 = vsyncpa [#allocation5], 0
    loop: start=0, step=1, limit=4
    $region2: #{tpu_custom_call.1} parent=1 // loop_pre_header
      _
    $region3: #{tpu_custom_call.1} parent=1 // loop_header
      %s15 = sphi 0, %s19
      %p16 = scmp.ge.s32.totalorder %s15, 4
      %s22 = sphi 0, %s34
      %s23 = sphi 0, %s30
      %s24 = sphi 0, %s22
      %s25 = sphi 0, %s23
      %s26 = sphi 0, %s24
      %s27 = sphi 0, %s25
      %s37 = sphi 0, %s39
      %s40 = sphi 0, %s37
      %s41 = sphi 0, %s40
      %s57 = sphi 0, %s41
      %s63 = sphi 0, %s65
      %s66 = sphi 0, %s63
      %s67 = sphi 0, %s66
      %s83 = sphi 0, %s67
      %s89 = sphi 0, %s91
      %s92 = sphi 0, %s89
      %s93 = sphi 0, %s92
      %s109 = sphi 0, %s93
      %s117 = sphi 0, %s119
      %s120 = sphi 0, %s117
      %s121 = sphi 0, %s120
      %s137 = sphi 0, %s121
      %s145 = sphi 0, %s147
      %s148 = sphi 0, %s145
      %s149 = sphi 0, %s148
      %s165 = sphi 0, %s149
      %s173 = sphi 0, %s175
      %s176 = sphi 0, %s173
      %s177 = sphi 0, %s176
      %s193 = sphi 0, %s177
    $region4: #{tpu_custom_call.1} parent=1 // loop_header_branch
      %18 = sbr.rel (%p16) target = $region8
    $region5: #{tpu_custom_call.1} parent=1 // loop_body
      %s20 = ssub.s32 %s15, 1
      %s21 = ssub.s32 %s15, 2
      %s28 = sadd.s32 1, %s23
      %p29 = scmp.ge.s32.totalorder %s28, 2
      %s30 = scalar_select %p29, 0, %s28
      %s31 = sadd.s32 1, %s22
      %s32 = scalar_select %p29, %s31, %s22
      %p33 = scmp.ge.s32.totalorder %s32, 1
      %s34 = scalar_select %p33, 0, %s32
      %s35 = ssub.s32 %s23, %s30
      %p36 = scmp.eq.s32.totalorder %s35, 0
      %s38 = sadd.s32 %s37, 1
      %s39 = scalar_select %p36, %s37, %s38
      %p42 = pneg %p36
      %p43 = scmp.eq.s32.totalorder %s15, 1
      %p44 = por %p42, %p43
      %p45 = scmp.ne.s32.totalorder %s37, %s40
      %p46 = scmp.eq.s32.totalorder %s15, 0
      %p47 = por %p45, %p46
      %p48 = scmp.ne.s32.totalorder %s37, %s40
      %p49 = scmp.eq.s32.totalorder %s20, 1
      %p50 = por %p48, %p49
      %p51 = scmp.ne.s32.totalorder %s40, %s41
      %p52 = scmp.eq.s32.totalorder %s20, 0
      %p53 = por %p51, %p52
      %p54 = scmp.ne.s32.totalorder %s40, %s41
      %p55 = scmp.eq.s32.totalorder %s21, 1
      %p56 = por %p54, %p55
      %p58 = scmp.ne.s32.totalorder %s41, %s57
      %p59 = scmp.eq.s32.totalorder %s21, 0
      %p60 = por %p58, %p59
      %s61 = ssub.s32 %s22, %s34
      %p62 = scmp.eq.s32.totalorder %s61, 0
      %s64 = sadd.s32 %s63, 1
      %s65 = scalar_select %p62, %s63, %s64
      %p68 = pneg %p62
      %p69 = scmp.eq.s32.totalorder %s15, 1
      %p70 = por %p68, %p69
      %p71 = scmp.ne.s32.totalorder %s63, %s66
      %p72 = scmp.eq.s32.totalorder %s15, 0
      %p73 = por %p71, %p72
      %p74 = scmp.ne.s32.totalorder %s63, %s66
      %p75 = scmp.eq.s32.totalorder %s20, 1
      %p76 = por %p74, %p75
      %p77 = scmp.ne.s32.totalorder %s66, %s67
      %p78 = scmp.eq.s32.totalorder %s20, 0
      %p79 = por %p77, %p78
      %p80 = scmp.ne.s32.totalorder %s66, %s67
      %p81 = scmp.eq.s32.totalorder %s21, 1
      %p82 = por %p80, %p81
      %p84 = scmp.ne.s32.totalorder %s67, %s83
      %p85 = scmp.eq.s32.totalorder %s21, 0
      %p86 = por %p84, %p85
      %s87 = ssub.s32 %s22, %s34
      %p88 = scmp.eq.s32.totalorder %s87, 0
      %s90 = sadd.s32 %s89, 1
      %s91 = scalar_select %p88, %s89, %s90
      %p94 = pneg %p88
      %p95 = scmp.eq.s32.totalorder %s15, 1
      %p96 = por %p94, %p95
      %p97 = scmp.ne.s32.totalorder %s89, %s92
      %p98 = scmp.eq.s32.totalorder %s15, 0
      %p99 = por %p97, %p98
      %p100 = scmp.ne.s32.totalorder %s89, %s92
      %p101 = scmp.eq.s32.totalorder %s20, 1
      %p102 = por %p100, %p101
      %p103 = scmp.ne.s32.totalorder %s92, %s93
      %p104 = scmp.eq.s32.totalorder %s20, 0
      %p105 = por %p103, %p104
      %p106 = scmp.ne.s32.totalorder %s92, %s93
      %p107 = scmp.eq.s32.totalorder %s21, 1
      %p108 = por %p106, %p107
      %p110 = scmp.ne.s32.totalorder %s93, %s109
      %p111 = scmp.eq.s32.totalorder %s21, 0
      %p112 = por %p110, %p111
      %s113 = ssub.s32 %s23, %s30
      %s114 = ssub.s32 %s22, %s34
      %s115 = sor.u32 %s113, %s114
      %p116 = scmp.eq.s32.totalorder %s115, 0
      %s118 = sadd.s32 %s117, 1
      %s119 = scalar_select %p116, %s117, %s118
      %p122 = pneg %p116
      %p123 = scmp.eq.s32.totalorder %s15, 1
      %p124 = por %p122, %p123
      %p125 = scmp.ne.s32.totalorder %s117, %s120
      %p126 = scmp.eq.s32.totalorder %s15, 0
      %p127 = por %p125, %p126
      %p128 = scmp.ne.s32.totalorder %s117, %s120
      %p129 = scmp.eq.s32.totalorder %s20, 1
      %p130 = por %p128, %p129
      %p131 = scmp.ne.s32.totalorder %s120, %s121
      %p132 = scmp.eq.s32.totalorder %s20, 0
      %p133 = por %p131, %p132
      %p134 = scmp.ne.s32.totalorder %s120, %s121
      %p135 = scmp.eq.s32.totalorder %s21, 1
      %p136 = por %p134, %p135
      %p138 = scmp.ne.s32.totalorder %s121, %s137
      %p139 = scmp.eq.s32.totalorder %s21, 0
      %p140 = por %p138, %p139
      %s141 = ssub.s32 %s23, %s30
      %s142 = ssub.s32 %s22, %s34
      %s143 = sor.u32 %s141, %s142
      %p144 = scmp.eq.s32.totalorder %s143, 0
      %s146 = sadd.s32 %s145, 1
      %s147 = scalar_select %p144, %s145, %s146
      %p150 = pneg %p144
      %p151 = scmp.eq.s32.totalorder %s15, 1
      %p152 = por %p150, %p151
      %p153 = scmp.ne.s32.totalorder %s145, %s148
      %p154 = scmp.eq.s32.totalorder %s15, 0
      %p155 = por %p153, %p154
      %p156 = scmp.ne.s32.totalorder %s145, %s148
      %p157 = scmp.eq.s32.totalorder %s20, 1
      %p158 = por %p156, %p157
      %p159 = scmp.ne.s32.totalorder %s148, %s149
      %p160 = scmp.eq.s32.totalorder %s20, 0
      %p161 = por %p159, %p160
      %p162 = scmp.ne.s32.totalorder %s148, %s149
      %p163 = scmp.eq.s32.totalorder %s21, 1
      %p164 = por %p162, %p163
      %p166 = scmp.ne.s32.totalorder %s149, %s165
      %p167 = scmp.eq.s32.totalorder %s21, 0
      %p168 = por %p166, %p167
      %s169 = ssub.s32 %s23, %s30
      %s170 = ssub.s32 %s22, %s34
      %s171 = sor.u32 %s169, %s170
      %p172 = scmp.eq.s32.totalorder %s171, 0
      %s174 = sadd.s32 %s173, 1
      %s175 = scalar_select %p172, %s173, %s174
      %p178 = pneg %p172
      %p179 = scmp.eq.s32.totalorder %s15, 1
      %p180 = por %p178, %p179
      %p181 = scmp.ne.s32.totalorder %s173, %s176
      %p182 = scmp.eq.s32.totalorder %s15, 0
      %p183 = por %p181, %p182
      %p184 = scmp.ne.s32.totalorder %s173, %s176
      %p185 = scmp.eq.s32.totalorder %s20, 1
      %p186 = por %p184, %p185
      %p187 = scmp.ne.s32.totalorder %s176, %s177
      %p188 = scmp.eq.s32.totalorder %s20, 0
      %p189 = por %p187, %p188
      %p190 = scmp.ne.s32.totalorder %s176, %s177
      %p191 = scmp.eq.s32.totalorder %s21, 1
      %p192 = por %p190, %p191
      %p194 = scmp.ne.s32.totalorder %s177, %s193
      %p195 = scmp.eq.s32.totalorder %s21, 0
      %p196 = por %p194, %p195
      %p197 = scmp.le.s32.totalorder 1, %s15
      %p198 = scmp.lt.s32.totalorder %s15, 3
      %p199 = pnand %p197, %p198
      %p200 = pneg %p199
      // Predicated region
      $region9: #{tpu_custom_call.1} parent=5 // pred_check
        _
      $region10: #{tpu_custom_call.1} parent=5 // pred_check_branch
        %202 = sbr.rel (%p199) target = $region12
      $region11: #{tpu_custom_call.1} parent=5 // pred_region
        %s203 = ssub.s32 %s15, 1
        // Predicated region
        $region13: #{tpu_custom_call.1} parent=11 // pred_check
          %p204 = pneg %p79
        $region14: #{tpu_custom_call.1} parent=11 // pred_check_branch
          %206 = sbr.rel (%p204) target = $region16
        $region15: #{tpu_custom_call.1} parent=11 // pred_region
          %s207 = smul.u32 2, %s24
          %p208 = scmp.lt.s32.totalorder %s207, 1
          %s209 = scalar_select %p208, %s207, 1
          %s210 = smul.addr %s209, 8
          %s211 = scalar_lea.vmem %s1, %s210
          %s212 = smul.u32 2, %s24
        $region16: #{tpu_custom_call.1} parent=11 // pred_fallthru
          _
        // Predicated region
        $region17: #{tpu_custom_call.1} parent=11 // pred_check
          %p213 = pneg %p105
        $region18: #{tpu_custom_call.1} parent=11 // pred_check_branch
          %215 = sbr.rel (%p213) target = $region20
        $region19: #{tpu_custom_call.1} parent=11 // pred_region
          %s216 = smul.u32 2, %s24
          %s218 = ssub.s32 256, 256
          %219 = vsyncadd [#allocation5], %s218
          %s220 = smul.addr %s216, 128
          %s221 = scalar_lea.hbm %s2, %s220
          %s223 = sshll.u32 [#allocation4], 4
          %s224 = int_to_ptr.vmem [resolvable:$true] %s223
          %226 = dma.hbm_to_vmem [thread:$0]  %s221, 256, %s224, [#allocation5]
        $region20: #{tpu_custom_call.1} parent=11 // pred_fallthru
          _
      $region12: #{tpu_custom_call.1} parent=5 // pred_fallthru
        _
      %p227 = scmp.lt.s32.totalorder %s15, 2
      // Predicated region
      $region21: #{tpu_custom_call.1} parent=5 // pred_check
        %p228 = pneg %p227
      $region22: #{tpu_custom_call.1} parent=5 // pred_check_branch
        %230 = sbr.rel (%p228) target = $region24
      $region23: #{tpu_custom_call.1} parent=5 // pred_region
        // Predicated region
        $region25: #{tpu_custom_call.1} parent=23 // pred_check
          %p231 = pneg %p47
        $region26: #{tpu_custom_call.1} parent=23 // pred_check_branch
          %233 = sbr.rel (%p231) target = $region28
        $region27: #{tpu_custom_call.1} parent=23 // pred_region
          %s234 = sand.u32 %s37, 1
          %s235 = scalar_lea.sflag [#allocation3], %s234
          %s236 = sand.u32 %s37, 1
          %s237 = smul.addr %s236, 32
          %s238 = scalar_lea.vmem [#allocation2], %s237
          %s240 = ssub.s32 512, 512
          %241 = vsyncadd %s235, %s240
          %s242 = smul.addr %s23, 8
          %s243 = smul.addr %s242, 64
          %s244 = scalar_lea.hbm %s0, %s243
          %s245 = sshll.u32 %s238, 4
          %s246 = int_to_ptr.vmem [resolvable:$true] %s245
          %251 = dma.hbm_to_vmem [thread:$0]  %s244, 512, %s246, %s235, 64, 64, 4
        $region28: #{tpu_custom_call.1} parent=23 // pred_fallthru
          _
        // Predicated region
        $region29: #{tpu_custom_call.1} parent=23 // pred_check
          %p252 = pneg %p127
        $region30: #{tpu_custom_call.1} parent=23 // pred_check_branch
          %254 = sbr.rel (%p252) target = $region32
        $region31: #{tpu_custom_call.1} parent=23 // pred_region
          %s255 = smul.u32 2, %s22
          %p256 = scmp.lt.s32.totalorder %s23, 1
          %s257 = scalar_select %p256, %s23, 1
          %p258 = scmp.lt.s32.totalorder %s255, 1
          %s259 = scalar_select %p258, %s255, 1
          %s260 = smul.addr %s257, 2
          %s261 = sadd.s32 %s259, %s260
          %s262 = scalar_lea.vmem %s3, %s261
          %s263 = smul.u32 2, %s22
        $region32: #{tpu_custom_call.1} parent=23 // pred_fallthru
          _
        // Predicated region
        $region33: #{tpu_custom_call.1} parent=23 // pred_check
          %p264 = pneg %p155
        $region34: #{tpu_custom_call.1} parent=23 // pred_check_branch
          %266 = sbr.rel (%p264) target = $region36
        $region35: #{tpu_custom_call.1} parent=23 // pred_region
          %s267 = smul.u32 2, %s22
          %p268 = scmp.lt.s32.totalorder %s23, 1
          %s269 = scalar_select %p268, %s23, 1
          %p270 = scmp.lt.s32.totalorder %s267, 1
          %s271 = scalar_select %p270, %s267, 1
          %s272 = smul.addr %s269, 2
          %s273 = sadd.s32 %s271, %s272
          %s274 = smul.addr %s273, 4
          %s275 = scalar_lea.vmem %s4, %s274
          %s276 = smul.u32 2, %s22
        $region36: #{tpu_custom_call.1} parent=23 // pred_fallthru
          _
      $region24: #{tpu_custom_call.1} parent=5 // pred_fallthru
        _
      %p277 = scmp.le.s32.totalorder 1, %s15
      %p278 = scmp.lt.s32.totalorder %s15, 3
      %p279 = pnand %p277, %p278
      %p280 = pneg %p279
      // Predicated region
      $region37: #{tpu_custom_call.1} parent=5 // pred_check
        _
      $region38: #{tpu_custom_call.1} parent=5 // pred_check_branch
        %282 = sbr.rel (%p279) target = $region40
      $region39: #{tpu_custom_call.1} parent=5 // pred_region
        %s283 = ssub.s32 %s15, 1
        %s284 = sand.u32 %s40, 1
        %s285 = scalar_lea.sflag [#allocation3], %s284
        %s286 = sand.u32 %s40, 1
        %s287 = smul.addr %s286, 32
        %s288 = scalar_lea.vmem [#allocation2], %s287
        // Predicated region
        $region41: #{tpu_custom_call.1} parent=39 // pred_check
          %p289 = pneg %p53
        $region42: #{tpu_custom_call.1} parent=39 // pred_check_branch
          %291 = sbr.rel (%p289) target = $region44
        $region43: #{tpu_custom_call.1} parent=39 // pred_region
          %292 = dma.done %s285, 512
        $region44: #{tpu_custom_call.1} parent=39 // pred_fallthru
          _
        // Predicated region
        $region45: #{tpu_custom_call.1} parent=39 // pred_check
          %p293 = pneg %p105
        $region46: #{tpu_custom_call.1} parent=39 // pred_check_branch
          %295 = sbr.rel (%p293) target = $region48
        $region47: #{tpu_custom_call.1} parent=39 // pred_region
          %296 = dma.done [#allocation5], 256
        $region48: #{tpu_custom_call.1} parent=39 // pred_fallthru
          _
        %s297 = sand.u32 %s40, 1
        %s298 = scalar_lea.sflag [#allocation3], %s297
        %s299 = sand.u32 %s40, 1
        %s300 = smul.addr %s299, 32
        %s301 = scalar_lea.vmem [#allocation2], %s300
        %p302 = pneg %p53
        %p303 = pneg %p50
        %s304 = smul.u32 2, %s24
        %p305 = scmp.lt.s32.totalorder %s304, 1
        %s306 = scalar_select %p305, %s304, 1
        %s307 = smul.addr %s306, 8
        %s308 = scalar_lea.vmem %s1, %s307
        %p309 = pneg %p79
        %p310 = pneg %p76
        %p311 = pneg %p105
        %p312 = pneg %p102
        %s313 = smul.u32 2, %s24
        %p314 = scmp.lt.s32.totalorder %s25, 1
        %s315 = scalar_select %p314, %s25, 1
        %p316 = scmp.lt.s32.totalorder %s313, 1
        %s317 = scalar_select %p316, %s313, 1
        %s318 = smul.addr %s315, 2
        %s319 = sadd.s32 %s317, %s318
        %s320 = scalar_lea.vmem %s3, %s319
        %p321 = pneg %p133
        %p322 = pneg %p130
        %s323 = smul.u32 2, %s24
        %p324 = scmp.lt.s32.totalorder %s25, 1
        %s325 = scalar_select %p324, %s25, 1
        %p326 = scmp.lt.s32.totalorder %s323, 1
        %s327 = scalar_select %p326, %s323, 1
        %s328 = smul.addr %s325, 2
        %s329 = sadd.s32 %s327, %s328
        %s330 = smul.addr %s329, 4
        %s331 = scalar_lea.vmem %s4, %s330
        %p332 = pneg %p161
        %p333 = pneg %p158
        %p334 = pneg %p189
        %p335 = pneg %p186
        %s336 = smul.u32 2, %s24
        %p337 = scmp.lt.s32.totalorder %s25, 1
        %s338 = scalar_select %p337, %s25, 1
        %p339 = scmp.lt.s32.totalorder %s336, 1
        %s340 = scalar_select %p339, %s336, 1
        %s341 = smul.addr %s338, 2
        %s342 = sadd.s32 %s340, %s341
        %s343 = smul.addr %s342, 4
        %s344 = scalar_lea.vmem %s5, %s343
        %s345 = smul.u32 2, %s24
        %p346 = scmp.lt.s32.totalorder %s345, 1
        %s347 = scalar_select %p346, %s345, 1
        %s348 = smul.addr %s347, 8
        %s349 = scalar_lea.vmem %s1, %s348
        %s350 = smul.u32 2, %s24
        %s351 = smul.u32 2, %s24
        %s352 = smul.u32 2, %s24
        %p353 = scmp.lt.s32.totalorder %s25, 1
        %s354 = scalar_select %p353, %s25, 1
        %p355 = scmp.lt.s32.totalorder %s352, 1
        %s356 = scalar_select %p355, %s352, 1
        %s357 = smul.addr %s354, 2
        %s358 = sadd.s32 %s356, %s357
        %s359 = scalar_lea.vmem %s3, %s358
        %s360 = smul.u32 2, %s24
        %s361 = smul.u32 2, %s24
        %p362 = scmp.lt.s32.totalorder %s25, 1
        %s363 = scalar_select %p362, %s25, 1
        %p364 = scmp.lt.s32.totalorder %s361, 1
        %s365 = scalar_select %p364, %s361, 1
        %s366 = smul.addr %s363, 2
        %s367 = sadd.s32 %s365, %s366
        %s368 = smul.addr %s367, 4
        %s369 = scalar_lea.vmem %s4, %s368
        %s370 = smul.u32 2, %s24
        %s371 = smul.u32 2, %s24
        %p372 = scmp.lt.s32.totalorder %s25, 1
        %s373 = scalar_select %p372, %s25, 1
        %p374 = scmp.lt.s32.totalorder %s371, 1
        %s375 = scalar_select %p374, %s371, 1
        %s376 = smul.addr %s373, 2
        %s377 = sadd.s32 %s375, %s376
        %s378 = smul.addr %s377, 4
        %s379 = scalar_lea.vmem %s5, %s378
        %s380 = smul.u32 2, %s24
        %v382 = vld [vmem:[%s349] sm:$0xff]
        %v383 = vld [vmem:[%s349 + $0x8] sm:$0xff]
        %v384 = vld [vmem:[#allocation4] sm:$0xff]
        %v385 = vld [vmem:[#allocation4 + $0x8] sm:$0xff]
        %v386 = vlaneseq
        %v387 = vshrl.u32 %v386, 7
        %v388 = vsub.s32 0, %v387
        %v389 = vrot.slane %v382, %v388
        %v390 = vlaneseq
        %v391 = vshrl.u32 %v390, 7
        %v392 = vsub.s32 0, %v391
        %v393 = vrot.slane %v383, %v392
        %v394 = vmul.f32 %v389, %v384
        %v395 = vmul.f32 %v393, %v385
        %v396 = vlaneseq
        %v397 = vshrl.u32 %v396, 7
        %v398 = vsub.s32 1, %v397
        %v399 = vrot.slane %v382, %v398
        %v400 = vlaneseq
        %v401 = vshrl.u32 %v400, 7
        %v402 = vsub.s32 1, %v401
        %v403 = vrot.slane %v383, %v402
        %v404 = vmul.f32 %v399, %v384
        %v405 = vmul.f32 %v403, %v385
        %v406 = vlaneseq
        %v407 = vshrl.u32 %v406, 7
        %v408 = vsub.s32 2, %v407
        %v409 = vrot.slane %v382, %v408
        %v410 = vlaneseq
        %v411 = vshrl.u32 %v410, 7
        %v412 = vsub.s32 2, %v411
        %v413 = vrot.slane %v383, %v412
        %v414 = vmul.f32 %v409, %v384
        %v415 = vmul.f32 %v413, %v385
        %v416 = vlaneseq
        %v417 = vshrl.u32 %v416, 7
        %v418 = vsub.s32 3, %v417
        %v419 = vrot.slane %v382, %v418
        %v420 = vlaneseq
        %v421 = vshrl.u32 %v420, 7
        %v422 = vsub.s32 3, %v421
        %v423 = vrot.slane %v383, %v422
        %v424 = vmul.f32 %v419, %v384
        %v425 = vmul.f32 %v423, %v385
        %v426 = vlaneseq
        %v427 = vshrl.u32 %v426, 7
        %v428 = vsub.s32 4, %v427
        %v429 = vrot.slane %v382, %v428
        %v430 = vlaneseq
        %v431 = vshrl.u32 %v430, 7
        %v432 = vsub.s32 4, %v431
        %v433 = vrot.slane %v383, %v432
        %v434 = vmul.f32 %v429, %v384
        %v435 = vmul.f32 %v433, %v385
        %v436 = vlaneseq
        %v437 = vshrl.u32 %v436, 7
        %v438 = vsub.s32 5, %v437
        %v439 = vrot.slane %v382, %v438
        %v440 = vlaneseq
        %v441 = vshrl.u32 %v440, 7
        %v442 = vsub.s32 5, %v441
        %v443 = vrot.slane %v383, %v442
        %v444 = vmul.f32 %v439, %v384
        %v445 = vmul.f32 %v443, %v385
        %v446 = vlaneseq
        %v447 = vshrl.u32 %v446, 7
        %v448 = vsub.s32 6, %v447
        %v449 = vrot.slane %v382, %v448
        %v450 = vlaneseq
        %v451 = vshrl.u32 %v450, 7
        %v452 = vsub.s32 6, %v451
        %v453 = vrot.slane %v383, %v452
        %v454 = vmul.f32 %v449, %v384
        %v455 = vmul.f32 %v453, %v385
        %v456 = vlaneseq
        %v457 = vshrl.u32 %v456, 7
        %v458 = vsub.s32 7, %v457
        %v459 = vrot.slane %v382, %v458
        %v460 = vlaneseq
        %v461 = vshrl.u32 %v460, 7
        %v462 = vsub.s32 7, %v461
        %v463 = vrot.slane %v383, %v462
        %v464 = vmul.f32 %v459, %v384
        %v465 = vmul.f32 %v463, %v385
        %v466 = vpack.c.bf16 %v404, %v394
        %v467 = vpack.c.bf16 %v405, %v395
        %v468 = vpack.c.bf16 %v424, %v414
        %v469 = vpack.c.bf16 %v425, %v415
        %v470 = vpack.c.bf16 %v444, %v434
        %v471 = vpack.c.bf16 %v445, %v435
        %v472 = vpack.c.bf16 %v464, %v454
        %v473 = vpack.c.bf16 %v465, %v455
        %v474 = vld [vmem:[%s288] sm:$0xf]
        %v475 = vld [vmem:[%s288 + $0x4] sm:$0xf]
        %v476 = vld [vmem:[%s288 + $0x8] sm:$0xf]
        %v477 = vld [vmem:[%s288 + $0xc] sm:$0xf]
        %v478 = vld [vmem:[%s288 + $0x10] sm:$0xf]
        %v479 = vld [vmem:[%s288 + $0x14] sm:$0xf]
        %v480 = vld [vmem:[%s288 + $0x18] sm:$0xf]
        %v481 = vld [vmem:[%s288 + $0x1c] sm:$0xf]
        %v490 = vunpack.c.l.b16 %v474
        %v491 = vunpack.c.l.b16 %v475
        %v492 = vunpack.c.l.b16 %v476
        %v493 = vunpack.c.l.b16 %v477
        %v494 = vunpack.c.l.b16 %v478
        %v495 = vunpack.c.l.b16 %v479
        %v496 = vunpack.c.l.b16 %v480
        %v497 = vunpack.c.l.b16 %v481
        %v498 = vpack.c.b16 %v491, %v490
        %v499 = vpack.c.b16 %v493, %v492
        %v500 = vpack.c.b16 %v495, %v494
        %v501 = vpack.c.b16 %v497, %v496
        %vm502 = vcmask 523264
        %v504 = vsel %vm502, %v498, 0
        %v507 = vsel %vm502, %v499, 0
        %v510 = vsel %vm502, %v500, 0
        %v513 = vsel %vm502, %v501, 0
        %515 = vmatprep.subr.bf16.mxu0 0
        %516 = vmatpush1.bf16.msra.mxu0 0
        %517 = vmatprep.subr.bf16.mxu0 0
        %518 = vmatpush1.bf16.msra.mxu0 0
        %519 = vmatprep.subr.bf16.mxu0 0
        %520 = vmatpush1.bf16.msra.mxu0 0
        %521 = vmatprep.subr.bf16.mxu0 0
        %522 = vmatpush1.bf16.msra.mxu0 0
        %523 = vmatprep.subr.bf16.mxu0 %v473
        %524 = vmatpush1.bf16.msra.mxu0 %v472
        %525 = vmatprep.subr.bf16.mxu0 %v471
        %526 = vmatpush1.bf16.msra.mxu0 %v470
        %527 = vmatprep.subr.bf16.mxu0 %v469
        %528 = vmatpush1.bf16.msra.mxu0 %v468
        %529 = vmatprep.subr.bf16.mxu0 %v467
        %530 = vmatpush1.bf16.msra.mxu0 %v466
        %531 = vmatprep.subr.bf16.mxu0 0
        %532 = vmatpush2.bf16.msra.mxu0 0
        %533 = vmatprep.subr.bf16.mxu0 0
        %534 = vmatpush2.bf16.msra.mxu0 0
        %535 = vmatprep.subr.bf16.mxu0 0
        %536 = vmatpush2.bf16.msra.mxu0 0
        %537 = vmatprep.subr.bf16.mxu0 0
        %538 = vmatpush2.bf16.msra.mxu0 0
        %539 = vmatprep.subr.bf16.mxu0 0
        %540 = vmatpush2.bf16.msra.mxu0 0
        %541 = vmatprep.subr.bf16.mxu0 0
        %542 = vmatpush2.bf16.msra.mxu0 0
        %543 = vmatprep.subr.bf16.mxu0 0
        %544 = vmatpush2.bf16.msra.mxu0 0
        %545 = vmatprep.subr.bf16.mxu0 0
        %546 = vmatpush2.bf16.msra.mxu0 0
        %547 = vmatprep.mubr.bf16.mxu0 0
        %548 = vmatmul.mubr.bf16.gmra.mxu0 %v504
        %v549 = vpop.f32.mrf.mxu0
        %v550 = vadd.f32 0.0, %v549
        %v551 = vpop.f32.mrf.mxu0
        %v552 = vadd.f32 0.0, %v551
        %v553 = vpop.f32.mrf.mxu0
        %v554 = vadd.f32 0.0, %v553
        %v555 = vpop.f32.mrf.mxu0
        %v556 = vadd.f32 0.0, %v555
        %557 = vmatprep.mubr.bf16.mxu0 0
        %558 = vmatmul.mubr.bf16.gmra.mxu0 %v507
        %v559 = vpop.f32.mrf.mxu0
        %v560 = vadd.f32 0.0, %v559
        %v561 = vpop.f32.mrf.mxu0
        %v562 = vadd.f32 0.0, %v561
        %v563 = vpop.f32.mrf.mxu0
        %v564 = vadd.f32 0.0, %v563
        %v565 = vpop.f32.mrf.mxu0
        %v566 = vadd.f32 0.0, %v565
        %567 = vmatprep.mubr.bf16.mxu0 0
        %568 = vmatmul.mubr.bf16.gmra.mxu0 %v510
        %v569 = vpop.f32.mrf.mxu0
        %v570 = vadd.f32 0.0, %v569
        %v571 = vpop.f32.mrf.mxu0
        %v572 = vadd.f32 0.0, %v571
        %v573 = vpop.f32.mrf.mxu0
        %v574 = vadd.f32 0.0, %v573
        %v575 = vpop.f32.mrf.mxu0
        %v576 = vadd.f32 0.0, %v575
        %577 = vmatprep.mubr.bf16.mxu0 0
        %578 = vmatmul.mubr.bf16.gmra.mxu0 %v513
        %v579 = vpop.f32.mrf.mxu0
        %v580 = vadd.f32 0.0, %v579
        %v581 = vpop.f32.mrf.mxu0
        %v582 = vadd.f32 0.0, %v581
        %v583 = vpop.f32.mrf.mxu0
        %v584 = vadd.f32 0.0, %v583
        %v585 = vpop.f32.mrf.mxu0
        %v586 = vadd.f32 0.0, %v585
        %587 = vdwg.mxu0
        %v588 = vld [vmem:[%s359] sm:$0x3]
        %v589 = vmul.f32 %v588, 4.0
        %v590 = vmax.f32 %v589, 0.5
        %v591 = vmin.f32 %v590, 3.5
        %v592 = vsub.f32 %v591, 0.5
        %v593 = vand.u32 2147483647, %v592
        %v594 = vsub.f32 1.0, %v593
        %v595 = vmax.f32 %v594, 0.0
        %v596 = vsub.f32 %v591, 1.5
        %v597 = vand.u32 2147483647, %v596
        %v598 = vsub.f32 1.0, %v597
        %v599 = vmax.f32 %v598, 0.0
        %v600 = vsub.f32 %v591, 2.5
        %v601 = vand.u32 2147483647, %v600
        %v602 = vsub.f32 1.0, %v601
        %v603 = vmax.f32 %v602, 0.0
        %v604 = vsub.f32 %v591, 3.5
        %v605 = vand.u32 2147483647, %v604
        %v606 = vsub.f32 1.0, %v605
        %v607 = vmax.f32 %v606, 0.0
        %v609 = vlaneseq
        %v610 = vshrl.u32 %v609, 7
        %v611 = vsub.s32 0, %v610
        %v612 = vrot.slane %v595, %v611
        %v613 = vlaneseq
        %v614 = vshrl.u32 %v613, 7
        %v615 = vsub.s32 1, %v614
        %v616 = vrot.slane %v595, %v615
        %v619 = vmul.f32 %v612, %v550
        %v620 = vmul.f32 %v616, %v552
        %v622 = vlaneseq
        %v623 = vshrl.u32 %v622, 7
        %v624 = vsub.s32 0, %v623
        %v625 = vrot.slane %v599, %v624
        %v626 = vlaneseq
        %v627 = vshrl.u32 %v626, 7
        %v628 = vsub.s32 1, %v627
        %v629 = vrot.slane %v599, %v628
        %v632 = vmul.f32 %v625, %v560
        %v633 = vmul.f32 %v629, %v562
        %v634 = vadd.f32 %v619, %v632
        %v635 = vadd.f32 %v620, %v633
        %v637 = vlaneseq
        %v638 = vshrl.u32 %v637, 7
        %v639 = vsub.s32 0, %v638
        %v640 = vrot.slane %v603, %v639
        %v641 = vlaneseq
        %v642 = vshrl.u32 %v641, 7
        %v643 = vsub.s32 1, %v642
        %v644 = vrot.slane %v603, %v643
        %v647 = vmul.f32 %v640, %v570
        %v648 = vmul.f32 %v644, %v572
        %v649 = vadd.f32 %v634, %v647
        %v650 = vadd.f32 %v635, %v648
        %v652 = vlaneseq
        %v653 = vshrl.u32 %v652, 7
        %v654 = vsub.s32 0, %v653
        %v655 = vrot.slane %v607, %v654
        %v656 = vlaneseq
        %v657 = vshrl.u32 %v656, 7
        %v658 = vsub.s32 1, %v657
        %v659 = vrot.slane %v607, %v658
        %v662 = vmul.f32 %v655, %v580
        %v663 = vmul.f32 %v659, %v582
        %v664 = vadd.f32 %v649, %v662
        %v665 = vadd.f32 %v650, %v663
        %v666 = vmul.f32 %v612, %v554
        %v667 = vmul.f32 %v616, %v556
        %v668 = vmul.f32 %v625, %v564
        %v669 = vmul.f32 %v629, %v566
        %v670 = vadd.f32 %v666, %v668
        %v671 = vadd.f32 %v667, %v669
        %v672 = vmul.f32 %v640, %v574
        %v673 = vmul.f32 %v644, %v576
        %v674 = vadd.f32 %v670, %v672
        %v675 = vadd.f32 %v671, %v673
        %v676 = vmul.f32 %v655, %v584
        %v677 = vmul.f32 %v659, %v586
        %v678 = vadd.f32 %v674, %v676
        %v679 = vadd.f32 %v675, %v677
        %v680 = vld [vmem:[%s369] sm:$0x77]
        %v682 = vlaneseq
        %v683 = vshrl.u32 %v682, 7
        %v684 = vsub.s32 0, %v683
        %v685 = vrot.slane %v680, %v684
        %v686 = vlaneseq
        %v687 = vshrl.u32 %v686, 7
        %v688 = vsub.s32 4, %v687
        %v689 = vrot.slane %v680, %v688
        %v692 = vlaneseq
        %v693 = vshrl.u32 %v692, 7
        %v694 = vsub.s32 0, %v693
        %v695 = vrot.slane %v685, %v694
        %v696 = vlaneseq
        %v697 = vshrl.u32 %v696, 7
        %v698 = vsub.s32 0, %v697
        %v699 = vrot.slane %v689, %v698
        %v700 = vmul.f32 %v664, %v695
        %v701 = vmul.f32 %v665, %v699
        %v704 = vrot.slane %v700, 7
        %v705 = vrot.slane %v701, 7
        %v708 = vadd.f32 %v678, %v704
        %v709 = vadd.f32 %v679, %v705
        %v710 = vlaneseq
        %v711 = vshrl.u32 %v710, 7
        %v712 = vsub.s32 1, %v711
        %v713 = vrot.slane %v680, %v712
        %v714 = vlaneseq
        %v715 = vshrl.u32 %v714, 7
        %v716 = vsub.s32 5, %v715
        %v717 = vrot.slane %v680, %v716
        %v720 = vlaneseq
        %v721 = vshrl.u32 %v720, 7
        %v722 = vsub.s32 1, %v721
        %v723 = vrot.slane %v713, %v722
        %v724 = vlaneseq
        %v725 = vshrl.u32 %v724, 7
        %v726 = vsub.s32 1, %v725
        %v727 = vrot.slane %v717, %v726
        %v728 = vmul.f32 %v664, %v723
        %v729 = vmul.f32 %v665, %v727
        %v732 = vrot.slane %v728, 2
        %v733 = vrot.slane %v729, 2
        %v736 = vadd.f32 %v708, %v732
        %v737 = vadd.f32 %v709, %v733
        %v738 = vlaneseq
        %v739 = vshrl.u32 %v738, 7
        %v740 = vsub.s32 2, %v739
        %v741 = vrot.slane %v680, %v740
        %v742 = vlaneseq
        %v743 = vshrl.u32 %v742, 7
        %v744 = vsub.s32 6, %v743
        %v745 = vrot.slane %v680, %v744
        %v748 = vlaneseq
        %v749 = vshrl.u32 %v748, 7
        %v750 = vsub.s32 2, %v749
        %v751 = vrot.slane %v741, %v750
        %v752 = vlaneseq
        %v753 = vshrl.u32 %v752, 7
        %v754 = vsub.s32 2, %v753
        %v755 = vrot.slane %v745, %v754
        %v756 = vmul.f32 %v664, %v751
        %v757 = vmul.f32 %v665, %v755
        %v758 = vmul.f32 %v678, %v751
        %v759 = vmul.f32 %v679, %v755
        %vm764 = vcmask 1042432
        %v765 = vrot.slane %v756, 5
        %v766 = vrot.slane %v758, 5
        %v767 = vsel %vm764, %v765, %v766
        %v768 = vrot.slane %v757, 5
        %v769 = vrot.slane %v759, 5
        %v770 = vsel %vm764, %v768, %v769
        %v773 = vadd.f32 %v736, %v767
        %v774 = vadd.f32 %v737, %v770
        %v777 = vcombine.low %v773, %v774
        %v778 = vrot.slane %v777, 5
        %v779 = vrot.slane %v778, 4
        %781 = vst [vmem:[%s379] sm:$0x77] %v779
        %s782 = smul.u32 2, %s24
        %p783 = scmp.lt.s32.totalorder %s25, 1
        %s784 = scalar_select %p783, %s25, 1
        %p785 = scmp.lt.s32.totalorder %s782, 1
        %s786 = scalar_select %p785, %s782, 1
        %s787 = smul.addr %s784, 2
        %s788 = sadd.s32 %s786, %s787
        %s789 = smul.addr %s788, 4
        %s790 = scalar_lea.vmem %s5, %s789
        // Predicated region
        $region49: #{tpu_custom_call.1} parent=39 // pred_check
          %p791 = pneg %p186
        $region50: #{tpu_custom_call.1} parent=39 // pred_check_branch
          %793 = sbr.rel (%p791) target = $region52
        $region51: #{tpu_custom_call.1} parent=39 // pred_region
          %s794 = smul.u32 2, %s24
        $region52: #{tpu_custom_call.1} parent=39 // pred_fallthru
          _
      $region40: #{tpu_custom_call.1} parent=5 // pred_fallthru
        _
      %p795 = scmp.le.s32.totalorder 2, %s15
      // Predicated region
      $region53: #{tpu_custom_call.1} parent=5 // pred_check
        %p796 = pneg %p795
      $region54: #{tpu_custom_call.1} parent=5 // pred_check_branch
        %798 = sbr.rel (%p796) target = $region56
      $region55: #{tpu_custom_call.1} parent=5 // pred_region
        %s799 = ssub.s32 %s15, 2
        // Predicated region
        $region57: #{tpu_custom_call.1} parent=55 // pred_check
          %p800 = pneg %p192
        $region58: #{tpu_custom_call.1} parent=55 // pred_check_branch
          %802 = sbr.rel (%p800) target = $region60
        $region59: #{tpu_custom_call.1} parent=55 // pred_region
          %s803 = smul.u32 2, %s26
          %p804 = scmp.lt.s32.totalorder %s27, 1
          %s805 = scalar_select %p804, %s27, 1
          %p806 = scmp.lt.s32.totalorder %s803, 1
          %s807 = scalar_select %p806, %s803, 1
          %s808 = smul.addr %s805, 2
          %s809 = sadd.s32 %s807, %s808
          %s810 = smul.addr %s809, 4
          %s811 = scalar_lea.vmem %s5, %s810
        $region60: #{tpu_custom_call.1} parent=55 // pred_fallthru
          _
      $region56: #{tpu_custom_call.1} parent=5 // pred_fallthru
        _
    $region6: #{tpu_custom_call.1} parent=1 // loop_footer
      %s19 = sadd.s32 1, %s15
    $region7: #{tpu_custom_call.1} parent=1 // loop_footer_branch
      %14 = sbr.rel target = $region3
    $region8: #{tpu_custom_call.1} parent=1 // loop_exit
      _
    %812 = vsyncpa [#allocation3], 1
    %s813 = scalar_lea.sflag [#allocation3], 1
    %814 = vsyncpa %s813, 1
    %815 = vsyncpa [#allocation5], 1

</llo_original>
